<compile_context>
chip_gen: v7x
topology: tpu7x:2x2x1
jax: 0.10.0
libtpu: 0.0.40
codegen_flags: <defaults>
</compile_context>

<pallas_src>
import numpy as np
import jax
import jax.numpy as jnp
from jax.experimental import pallas as pl
from jax.experimental.pallas import tpu as pltpu

NUM_LAYERS = 3


# ----------------------------- Pallas kernel --------------------------------
def _lstm_kernel(maxlen_ref, lens_ref, x_ref, w_ref, b_ref, o_ref):
    # maxlen_ref: SMEM (1,) int32        max(len_seq) — dynamic loop trip count
    # lens_ref:   (B, 1) int32           per-sequence lengths (vector mask source)
    # x_ref:      (T, B, H) f32          embedded tokens, fully VMEM resident
    # w_ref:      (L, 2H, 4H) f32        fused [W_ih^T ; W_hh^T] per layer
    # b_ref:      (L, B, 4H) f32         (b_ih + b_hh) pre-broadcast over batch
    # o_ref:      (B, H) f32             h of last layer at each seq's final step
    B = o_ref.shape[0]
    H = o_ref.shape[1]

    lens = lens_ref[...]                  # (B, 1) int32, hoisted out of the loop
    n_steps = maxlen_ref[0]               # skip timesteps once every seq ended

    def step(t, carry):
        hs, cs = carry                    # tuples of (B, H) per layer
        mask = t < lens                   # (B, 1) bool
        x = x_ref[t]                      # (B, H) dynamic leading-axis load
        new_hs = []
        new_cs = []
        for layer in range(NUM_LAYERS):
            h_prev = hs[layer]
            c_prev = cs[layer]
            xh = jnp.concatenate([x, h_prev], axis=-1)          # (B, 2H)
            gates = jnp.dot(xh, w_ref[layer],
                            preferred_element_type=jnp.float32) \
                    + b_ref[layer]                               # (B, 4H) lane-dense
            i = jax.nn.sigmoid(gates[:, 0 * H:1 * H])
            f = jax.nn.sigmoid(gates[:, 1 * H:2 * H])
            g = jnp.tanh(gates[:, 2 * H:3 * H])
            o = jax.nn.sigmoid(gates[:, 3 * H:4 * H])

            c_new = f * c_prev + i * g
            h_new = o * jnp.tanh(c_new)

            # Packed-sequence semantics: freeze state once the sequence ended.
            h_upd = jnp.where(mask, h_new, h_prev)
            c_upd = jnp.where(mask, c_new, c_prev)
            new_hs.append(h_upd)
            new_cs.append(c_upd)
            x = h_upd                      # input to next layer
        return tuple(new_hs), tuple(new_cs)

    zeros = jnp.zeros((B, H), jnp.float32)
    init = (tuple(zeros for _ in range(NUM_LAYERS)),
            tuple(zeros for _ in range(NUM_LAYERS)))
    hs, _ = jax.lax.fori_loop(0, n_steps, step, init)
    o_ref[...] = hs[NUM_LAYERS - 1]


# ------------------------------- wrapper -------------------------------------
def char_seq_encoder_forward(padded_seq, len_seq, kernel_params):
    embed, w_fused, bias_b = kernel_params
    T, B = padded_seq.shape
    H = embed.shape[1]

    # Embedding gather stays outside the kernel (irregular gather has no
    # rectangular BlockSpec form; at 17x32 the table is 2 KB so this is glue).
    # TODO(synk): fuse the gather via scalar-prefetched ids once vocab/H grow.
    x_embed = jnp.take(embed, padded_seq, axis=0).astype(jnp.float32)  # (T, B, H)

    len_seq = len_seq.astype(jnp.int32)
    max_len = jnp.max(len_seq).reshape(1)          # (1,) -> SMEM scalar prefetch
    lens_2d = len_seq[:, None]                     # (B, 1) -> VMEM mask source

    out = pl.pallas_call(
        _lstm_kernel,
        out_shape=jax.ShapeDtypeStruct((B, H), jnp.float32),
        grid_spec=pltpu.PrefetchScalarGridSpec(
            num_scalar_prefetch=1,                 # max_len lands in SMEM
            grid=(1,),                             # whole recurrence in one step
            in_specs=[
                pl.BlockSpec((B, 1), lambda i, ml: (0, 0)),
                pl.BlockSpec((T, B, H), lambda i, ml: (0, 0, 0)),
                pl.BlockSpec((NUM_LAYERS, 2 * H, 4 * H), lambda i, ml: (0, 0, 0)),
                pl.BlockSpec((NUM_LAYERS, B, 4 * H), lambda i, ml: (0, 0, 0)),
            ],
            out_specs=pl.BlockSpec((B, H), lambda i, ml: (0, 0)),
        ),
        compiler_params=pltpu.CompilerParams(
            dimension_semantics=("arbitrary",)),   # recurrence is sequential
    )(max_len, lens_2d, x_embed, w_fused, bias_b)
    return out


# --------------------------- parameter handling ------------------------------
def init_params(key, vocab_size, hidden):
    """Deterministic init matching the PyTorch module's shapes."""
    keys = jax.random.split(key, 1 + 4 * NUM_LAYERS)
    embed = jax.random.normal(keys[0], (vocab_size, hidden), jnp.float32)
    bound = 1.0 / np.sqrt(hidden)
    wih, whh, bih, bhh = [], [], [], []
    for l in range(NUM_LAYERS):
        k1, k2, k3, k4 = keys[1 + 4 * l: 5 + 4 * l]
        wih.append(jax.random.uniform(k1, (4 * hidden, hidden), jnp.float32, -bound, bound))
        whh.append(jax.random.uniform(k2, (4 * hidden, hidden), jnp.float32, -bound, bound))
        bih.append(jax.random.uniform(k3, (4 * hidden,), jnp.float32, -bound, bound))
        bhh.append(jax.random.uniform(k4, (4 * hidden,), jnp.float32, -bound, bound))
    return embed, wih, whh, bih, bhh


def pack_kernel_params(embed, wih, whh, bih, bhh, batch_size):
    """PyTorch-shaped LSTM weights -> fused kernel layout.

    Per layer: W = [W_ih^T ; W_hh^T]  (2H, 4H), gate column order i|f|g|o,
               bias = (b_ih + b_hh) broadcast to (B, 4H).
    """
    H = embed.shape[1]
    w_fused = jnp.stack([
        jnp.concatenate([wih[l].T, whh[l].T], axis=0)        # (2H, 4H)
        for l in range(NUM_LAYERS)])                         # (L, 2H, 4H)
    bias_b = jnp.stack([
        jnp.broadcast_to((bih[l] + bhh[l])[None, :], (batch_size, 4 * H))
        for l in range(NUM_LAYERS)])                         # (L, B, 4H)
    return embed, w_fused, bias_b


# ------------------------------ JAX reference ---------------------------------
def reference_forward(padded_seq, len_seq, embed, wih, whh, bih, bhh):
    T, B = padded_seq.shape
    H = embed.shape[1]
    x_embed = jnp.take(embed, padded_seq, axis=0)
    h0 = jnp.zeros((NUM_LAYERS, B, H), jnp.float32)
    c0 = jnp.zeros((NUM_LAYERS, B, H), jnp.float32)

    def step(carry, inp):
        h, c = carry
        x_t, t = inp
        mask = (t < len_seq).astype(jnp.float32)[:, None]
        x = x_t
        hs, cs = [], []
        for l in range(NUM_LAYERS):
            gates = x @ wih[l].T + bih[l] + h[l] @ whh[l].T + bhh[l]
            i, f, g, o = jnp.split(gates, 4, axis=-1)
            i, f, o = jax.nn.sigmoid(i), jax.nn.sigmoid(f), jax.nn.sigmoid(o)
            g = jnp.tanh(g)
            cn = f * c[l] + i * g
            hn = o * jnp.tanh(cn)
            hu = mask * hn + (1.0 - mask) * h[l]
            cu = mask * cn + (1.0 - mask) * c[l]
            hs.append(hu)
            cs.append(cu)
            x = hu
        return (jnp.stack(hs), jnp.stack(cs)), None

    (h, _), _ = jax.lax.scan(step, (h0, c0), (x_embed, jnp.arange(T)))
    return h[-1]


# ---------------------------------- main --------------------------------------
if __name__ == "__main__":
    vocab_size, hidden = 17, 32
    T, B = 10, 8

    key = jax.random.PRNGKey(0)
    k_params, k_tok, k_len = jax.random.split(key, 3)

    raw = init_params(k_params, vocab_size, hidden)
    kernel_params = pack_kernel_params(*raw, batch_size=B)

    padded_seq = jax.random.randint(k_tok, (T, B), 0, vocab_size, jnp.int32)
    len_seq = jax.random.randint(k_len, (B,), 1, T + 1, jnp.int32)  # lens >= 1

    out = char_seq_encoder_forward(padded_seq, len_seq, kernel_params)
    out = jax.block_until_ready(out)

    ref = reference_forward(padded_seq, len_seq, *raw)
    np.testing.assert_allclose(np.asarray(out), np.asarray(ref), rtol=1e-5, atol=1e-5)

    print("KERNEL_OK")
</pallas_src>

<mosaic_0001>
module attributes {stable_mosaic.version = 11 : i64} {
  func.func @_lstm_kernel(%arg0: i32, %arg1: memref<1xi32, #tpu.memory_space<smem>>, %arg2: memref<8x1xi32, #tpu.memory_space<vmem>>, %arg3: memref<10x8x32xf32, #tpu.memory_space<vmem>>, %arg4: memref<3x64x128xf32, #tpu.memory_space<vmem>>, %arg5: memref<3x8x128xf32, #tpu.memory_space<vmem>>, %arg6: memref<8x32xf32, #tpu.memory_space<vmem>>) attributes {dimension_semantics = [#tpu.dimension_semantics<arbitrary>], iteration_bounds = array<i64: 1>, scalar_prefetch = 1 : i64, scratch_operands = 0 : i64, tpu.core_type = #tpu.core_type<tc>, window_params = [{pipeline_mode = #tpu.pipeline_mode<synchronous>, transform_indices = @transform_0, window_bounds = array<i64: 8, 1>}, {pipeline_mode = #tpu.pipeline_mode<synchronous>, transform_indices = @transform_1, window_bounds = array<i64: 10, 8, 32>}, {pipeline_mode = #tpu.pipeline_mode<synchronous>, transform_indices = @transform_2, window_bounds = array<i64: 3, 64, 128>}, {pipeline_mode = #tpu.pipeline_mode<synchronous>, transform_indices = @transform_3, window_bounds = array<i64: 3, 8, 128>}, {pipeline_mode = #tpu.pipeline_mode<synchronous>, transform_indices = @transform_4, window_bounds = array<i64: 8, 32>}]} {
    %c0 = arith.constant 0 : index
    %c0_0 = arith.constant 0 : index
    %0 = vector.load %arg2[%c0, %c0_0] : memref<8x1xi32, #tpu.memory_space<vmem>>, vector<8x1xi32>
    %c0_1 = arith.constant 0 : index
    %1 = memref.load %arg1[%c0_1] : memref<1xi32, #tpu.memory_space<smem>>
    %cst = arith.constant 0.000000e+00 : f32
    %2 = vector.broadcast %cst : f32 to vector<8x32xf32>
    %c0_i32 = arith.constant 0 : i32
    %3 = arith.subi %1, %c0_i32 : i32
    %4 = arith.addi %c0_i32, %3 : i32
    %c1_i32 = arith.constant 1 : i32
    %5:6 = scf.for %arg7 = %c0_i32 to %4 step %c1_i32 iter_args(%arg8 = %2, %arg9 = %2, %arg10 = %2, %arg11 = %2, %arg12 = %2, %arg13 = %2) -> (vector<8x32xf32>, vector<8x32xf32>, vector<8x32xf32>, vector<8x32xf32>, vector<8x32xf32>, vector<8x32xf32>)  : i32 {
      %7 = vector.broadcast %arg7 : i32 to vector<8x1xi32>
      %8 = arith.cmpi slt, %7, %0 : vector<8x1xi32>
      %9 = arith.index_cast %arg7 : i32 to index
      %c0_4 = arith.constant 0 : index
      %c0_5 = arith.constant 0 : index
      %10 = vector.load %arg3[%9, %c0_4, %c0_5] : memref<10x8x32xf32, #tpu.memory_space<vmem>>, vector<1x8x32xf32>
      %11 = vector.shape_cast %10 : vector<1x8x32xf32> to vector<8x32xf32>
      %12 = tpu.concatenate %11, %arg8 in 1 : vector<8x32xf32>, vector<8x32xf32> -> vector<8x64xf32>
      %c0_6 = arith.constant 0 : index
      %c0_7 = arith.constant 0 : index
      %c0_8 = arith.constant 0 : index
      %13 = vector.load %arg4[%c0_6, %c0_7, %c0_8] : memref<3x64x128xf32, #tpu.memory_space<vmem>>, vector<1x64x128xf32>
      %14 = vector.shape_cast %13 : vector<1x64x128xf32> to vector<64x128xf32>
      %cst_9 = arith.constant dense<0.000000e+00> : vector<8x128xf32>
      %15 = tpu.matmul %12, %14, %cst_9 {dimension_numbers = #tpu.dot_dimension_numbers<[1], [0], [0], [1], [0, 0, 1, 1], [], []>} : vector<8x64xf32>, vector<64x128xf32>, vector<8x128xf32> -> vector<8x128xf32>
      %c0_10 = arith.constant 0 : index
      %c0_11 = arith.constant 0 : index
      %c0_12 = arith.constant 0 : index
      %16 = vector.load %arg5[%c0_10, %c0_11, %c0_12] : memref<3x8x128xf32, #tpu.memory_space<vmem>>, vector<1x8x128xf32>
      %17 = vector.shape_cast %16 : vector<1x8x128xf32> to vector<8x128xf32>
      %18 = arith.addf %15, %17 : vector<8x128xf32>
      %19 = vector.extract_strided_slice %18 {offsets = [0, 0], sizes = [8, 32], strides = [1, 1]} : vector<8x128xf32> to vector<8x32xf32>
      %20 = arith.negf %19 : vector<8x32xf32>
      %21 = math.exp %20 : vector<8x32xf32>
      %cst_13 = arith.constant 1.000000e+00 : f32
      %22 = vector.broadcast %cst_13 : f32 to vector<8x32xf32>
      %23 = arith.addf %22, %21 : vector<8x32xf32>
      %24 = arith.divf %22, %23 : vector<8x32xf32>
      %25 = vector.extract_strided_slice %18 {offsets = [0, 32], sizes = [8, 32], strides = [1, 1]} : vector<8x128xf32> to vector<8x32xf32>
      %26 = arith.negf %25 : vector<8x32xf32>
      %27 = math.exp %26 : vector<8x32xf32>
      %cst_14 = arith.constant 1.000000e+00 : f32
      %28 = vector.broadcast %cst_14 : f32 to vector<8x32xf32>
      %29 = arith.addf %28, %27 : vector<8x32xf32>
      %30 = arith.divf %28, %29 : vector<8x32xf32>
      %31 = vector.extract_strided_slice %18 {offsets = [0, 64], sizes = [8, 32], strides = [1, 1]} : vector<8x128xf32> to vector<8x32xf32>
      %32 = math.tanh %31 : vector<8x32xf32>
      %33 = vector.extract_strided_slice %18 {offsets = [0, 96], sizes = [8, 32], strides = [1, 1]} : vector<8x128xf32> to vector<8x32xf32>
      %34 = arith.negf %33 : vector<8x32xf32>
      %35 = math.exp %34 : vector<8x32xf32>
      %cst_15 = arith.constant 1.000000e+00 : f32
      %36 = vector.broadcast %cst_15 : f32 to vector<8x32xf32>
      %37 = arith.addf %36, %35 : vector<8x32xf32>
      %38 = arith.divf %36, %37 : vector<8x32xf32>
      %39 = arith.mulf %30, %arg11 : vector<8x32xf32>
      %40 = arith.mulf %24, %32 : vector<8x32xf32>
      %41 = arith.addf %39, %40 : vector<8x32xf32>
      %42 = math.tanh %41 : vector<8x32xf32>
      %43 = arith.mulf %38, %42 : vector<8x32xf32>
      %44 = vector.shape_cast %8 : vector<8x1xi1> to vector<8x1xi1>
      %45 = vector.broadcast %44 : vector<8x1xi1> to vector<8x32xi1>
      %46 = arith.select %45, %43, %arg8 : vector<8x32xi1>, vector<8x32xf32>
      %47 = vector.shape_cast %8 : vector<8x1xi1> to vector<8x1xi1>
      %48 = vector.broadcast %47 : vector<8x1xi1> to vector<8x32xi1>
      %49 = arith.select %48, %41, %arg11 : vector<8x32xi1>, vector<8x32xf32>
      %50 = tpu.concatenate %46, %arg9 in 1 : vector<8x32xf32>, vector<8x32xf32> -> vector<8x64xf32>
      %c1 = arith.constant 1 : index
      %c0_16 = arith.constant 0 : index
      %c0_17 = arith.constant 0 : index
      %51 = vector.load %arg4[%c1, %c0_16, %c0_17] : memref<3x64x128xf32, #tpu.memory_space<vmem>>, vector<1x64x128xf32>
      %52 = vector.shape_cast %51 : vector<1x64x128xf32> to vector<64x128xf32>
      %cst_18 = arith.constant dense<0.000000e+00> : vector<8x128xf32>
      %53 = tpu.matmul %50, %52, %cst_18 {dimension_numbers = #tpu.dot_dimension_numbers<[1], [0], [0], [1], [0, 0, 1, 1], [], []>} : vector<8x64xf32>, vector<64x128xf32>, vector<8x128xf32> -> vector<8x128xf32>
      %c1_19 = arith.constant 1 : index
      %c0_20 = arith.constant 0 : index
      %c0_21 = arith.constant 0 : index
      %54 = vector.load %arg5[%c1_19, %c0_20, %c0_21] : memref<3x8x128xf32, #tpu.memory_space<vmem>>, vector<1x8x128xf32>
      %55 = vector.shape_cast %54 : vector<1x8x128xf32> to vector<8x128xf32>
      %56 = arith.addf %53, %55 : vector<8x128xf32>
      %57 = vector.extract_strided_slice %56 {offsets = [0, 0], sizes = [8, 32], strides = [1, 1]} : vector<8x128xf32> to vector<8x32xf32>
      %58 = arith.negf %57 : vector<8x32xf32>
      %59 = math.exp %58 : vector<8x32xf32>
      %cst_22 = arith.constant 1.000000e+00 : f32
      %60 = vector.broadcast %cst_22 : f32 to vector<8x32xf32>
      %61 = arith.addf %60, %59 : vector<8x32xf32>
      %62 = arith.divf %60, %61 : vector<8x32xf32>
      %63 = vector.extract_strided_slice %56 {offsets = [0, 32], sizes = [8, 32], strides = [1, 1]} : vector<8x128xf32> to vector<8x32xf32>
      %64 = arith.negf %63 : vector<8x32xf32>
      %65 = math.exp %64 : vector<8x32xf32>
      %cst_23 = arith.constant 1.000000e+00 : f32
      %66 = vector.broadcast %cst_23 : f32 to vector<8x32xf32>
      %67 = arith.addf %66, %65 : vector<8x32xf32>
      %68 = arith.divf %66, %67 : vector<8x32xf32>
      %69 = vector.extract_strided_slice %56 {offsets = [0, 64], sizes = [8, 32], strides = [1, 1]} : vector<8x128xf32> to vector<8x32xf32>
      %70 = math.tanh %69 : vector<8x32xf32>
      %71 = vector.extract_strided_slice %56 {offsets = [0, 96], sizes = [8, 32], strides = [1, 1]} : vector<8x128xf32> to vector<8x32xf32>
      %72 = arith.negf %71 : vector<8x32xf32>
      %73 = math.exp %72 : vector<8x32xf32>
      %cst_24 = arith.constant 1.000000e+00 : f32
      %74 = vector.broadcast %cst_24 : f32 to vector<8x32xf32>
      %75 = arith.addf %74, %73 : vector<8x32xf32>
      %76 = arith.divf %74, %75 : vector<8x32xf32>
      %77 = arith.mulf %68, %arg12 : vector<8x32xf32>
      %78 = arith.mulf %62, %70 : vector<8x32xf32>
      %79 = arith.addf %77, %78 : vector<8x32xf32>
      %80 = math.tanh %79 : vector<8x32xf32>
      %81 = arith.mulf %76, %80 : vector<8x32xf32>
      %82 = vector.shape_cast %8 : vector<8x1xi1> to vector<8x1xi1>
      %83 = vector.broadcast %82 : vector<8x1xi1> to vector<8x32xi1>
      %84 = arith.select %83, %81, %arg9 : vector<8x32xi1>, vector<8x32xf32>
      %85 = vector.shape_cast %8 : vector<8x1xi1> to vector<8x1xi1>
      %86 = vector.broadcast %85 : vector<8x1xi1> to vector<8x32xi1>
      %87 = arith.select %86, %79, %arg12 : vector<8x32xi1>, vector<8x32xf32>
      %88 = tpu.concatenate %84, %arg10 in 1 : vector<8x32xf32>, vector<8x32xf32> -> vector<8x64xf32>
      %c2 = arith.constant 2 : index
      %c0_25 = arith.constant 0 : index
      %c0_26 = arith.constant 0 : index
      %89 = vector.load %arg4[%c2, %c0_25, %c0_26] : memref<3x64x128xf32, #tpu.memory_space<vmem>>, vector<1x64x128xf32>
      %90 = vector.shape_cast %89 : vector<1x64x128xf32> to vector<64x128xf32>
      %cst_27 = arith.constant dense<0.000000e+00> : vector<8x128xf32>
      %91 = tpu.matmul %88, %90, %cst_27 {dimension_numbers = #tpu.dot_dimension_numbers<[1], [0], [0], [1], [0, 0, 1, 1], [], []>} : vector<8x64xf32>, vector<64x128xf32>, vector<8x128xf32> -> vector<8x128xf32>
      %c2_28 = arith.constant 2 : index
      %c0_29 = arith.constant 0 : index
      %c0_30 = arith.constant 0 : index
      %92 = vector.load %arg5[%c2_28, %c0_29, %c0_30] : memref<3x8x128xf32, #tpu.memory_space<vmem>>, vector<1x8x128xf32>
      %93 = vector.shape_cast %92 : vector<1x8x128xf32> to vector<8x128xf32>
      %94 = arith.addf %91, %93 : vector<8x128xf32>
      %95 = vector.extract_strided_slice %94 {offsets = [0, 0], sizes = [8, 32], strides = [1, 1]} : vector<8x128xf32> to vector<8x32xf32>
      %96 = arith.negf %95 : vector<8x32xf32>
      %97 = math.exp %96 : vector<8x32xf32>
      %cst_31 = arith.constant 1.000000e+00 : f32
      %98 = vector.broadcast %cst_31 : f32 to vector<8x32xf32>
      %99 = arith.addf %98, %97 : vector<8x32xf32>
      %100 = arith.divf %98, %99 : vector<8x32xf32>
      %101 = vector.extract_strided_slice %94 {offsets = [0, 32], sizes = [8, 32], strides = [1, 1]} : vector<8x128xf32> to vector<8x32xf32>
      %102 = arith.negf %101 : vector<8x32xf32>
      %103 = math.exp %102 : vector<8x32xf32>
      %cst_32 = arith.constant 1.000000e+00 : f32
      %104 = vector.broadcast %cst_32 : f32 to vector<8x32xf32>
      %105 = arith.addf %104, %103 : vector<8x32xf32>
      %106 = arith.divf %104, %105 : vector<8x32xf32>
      %107 = vector.extract_strided_slice %94 {offsets = [0, 64], sizes = [8, 32], strides = [1, 1]} : vector<8x128xf32> to vector<8x32xf32>
      %108 = math.tanh %107 : vector<8x32xf32>
      %109 = vector.extract_strided_slice %94 {offsets = [0, 96], sizes = [8, 32], strides = [1, 1]} : vector<8x128xf32> to vector<8x32xf32>
      %110 = arith.negf %109 : vector<8x32xf32>
      %111 = math.exp %110 : vector<8x32xf32>
      %cst_33 = arith.constant 1.000000e+00 : f32
      %112 = vector.broadcast %cst_33 : f32 to vector<8x32xf32>
      %113 = arith.addf %112, %111 : vector<8x32xf32>
      %114 = arith.divf %112, %113 : vector<8x32xf32>
      %115 = arith.mulf %106, %arg13 : vector<8x32xf32>
      %116 = arith.mulf %100, %108 : vector<8x32xf32>
      %117 = arith.addf %115, %116 : vector<8x32xf32>
      %118 = math.tanh %117 : vector<8x32xf32>
      %119 = arith.mulf %114, %118 : vector<8x32xf32>
      %120 = vector.shape_cast %8 : vector<8x1xi1> to vector<8x1xi1>
      %121 = vector.broadcast %120 : vector<8x1xi1> to vector<8x32xi1>
      %122 = arith.select %121, %119, %arg10 : vector<8x32xi1>, vector<8x32xf32>
      %123 = vector.shape_cast %8 : vector<8x1xi1> to vector<8x1xi1>
      %124 = vector.broadcast %123 : vector<8x1xi1> to vector<8x32xi1>
      %125 = arith.select %124, %117, %arg13 : vector<8x32xi1>, vector<8x32xf32>
      scf.yield %46, %84, %122, %49, %87, %125 : vector<8x32xf32>, vector<8x32xf32>, vector<8x32xf32>, vector<8x32xf32>, vector<8x32xf32>, vector<8x32xf32>
    }
    %c0_2 = arith.constant 0 : index
    %c0_3 = arith.constant 0 : index
    %6 = vector.load %arg6[%c0_2, %c0_3] : memref<8x32xf32, #tpu.memory_space<vmem>>, vector<8x32xf32>
    tpu.vector_store %arg6[%c0_2, %c0_3], %5#2 {strides = array<i32>} : memref<8x32xf32, #tpu.memory_space<vmem>>, vector<8x32xf32>,
    return
  }
  func.func @transform_0(%arg0: i32, %arg1: memref<1xi32, #tpu.memory_space<smem>>) -> (i32, i32) {
    %c0_i32 = arith.constant 0 : i32
    %c0_i32_0 = arith.constant 0 : i32
    %c0_i32_1 = arith.constant 0 : i32
    return %c0_i32, %c0_i32_0 : i32, i32
  }
  func.func @transform_1(%arg0: i32, %arg1: memref<1xi32, #tpu.memory_space<smem>>) -> (i32, i32, i32) {
    %c0_i32 = arith.constant 0 : i32
    %c0_i32_0 = arith.constant 0 : i32
    %c0_i32_1 = arith.constant 0 : i32
    %c0_i32_2 = arith.constant 0 : i32
    return %c0_i32, %c0_i32_0, %c0_i32_1 : i32, i32, i32
  }
  func.func @transform_2(%arg0: i32, %arg1: memref<1xi32, #tpu.memory_space<smem>>) -> (i32, i32, i32) {
    %c0_i32 = arith.constant 0 : i32
    %c0_i32_0 = arith.constant 0 : i32
    %c0_i32_1 = arith.constant 0 : i32
    %c0_i32_2 = arith.constant 0 : i32
    return %c0_i32, %c0_i32_0, %c0_i32_1 : i32, i32, i32
  }
  func.func @transform_3(%arg0: i32, %arg1: memref<1xi32, #tpu.memory_space<smem>>) -> (i32, i32, i32) {
    %c0_i32 = arith.constant 0 : i32
    %c0_i32_0 = arith.constant 0 : i32
    %c0_i32_1 = arith.constant 0 : i32
    %c0_i32_2 = arith.constant 0 : i32
    return %c0_i32, %c0_i32_0, %c0_i32_1 : i32, i32, i32
  }
  func.func @transform_4(%arg0: i32, %arg1: memref<1xi32, #tpu.memory_space<smem>>) -> (i32, i32) {
    %c0_i32 = arith.constant 0 : i32
    %c0_i32_0 = arith.constant 0 : i32
    %c0_i32_1 = arith.constant 0 : i32
    return %c0_i32, %c0_i32_0 : i32, i32
  }
}

</mosaic_0001>

<llo_original>
// kernel: tpu_custom_call.1
$region0: #{tpu_custom_call.1}
  #allocation0 [shape = 'u32[]', space=smem, size = 0x4, offset = 0x4, fixed_abs, tag = 'smem constant byte address 0x4 - core index']
  #allocation1 [shape = 'u32[144,128]{1,0:T(1,128)}', space=vmem, size = 0x12000, scoped, tag = 'internal scratch']
  #allocation2 [shape = 's32[1]{0}', space=sflag, size = 0x4, scoped, tag = 'scoped memory for tpu_custom_call.1']
  #allocation3 [shape = 's32[1]{0:T(128)S(6)}', space=smem, size = 0x200, scoped, tag = 'prefetched SMEM operand 0']
  %s0 = inlined_call_operand.<no memory space> [shape: s32[1], index: 0, kind: input, shape index: {}]
  %s1 = inlined_call_operand.vmem [shape: s32[8,1], index: 1, kind: input, shape index: {}]
  %s2 = inlined_call_operand.hbm [shape: f32[10,8,32], index: 2, kind: input, shape index: {}]
  %s3 = inlined_call_operand.hbm [shape: f32[3,64,128], index: 3, kind: input, shape index: {}]
  %s4 = inlined_call_operand.vmem [shape: f32[3,8,128], index: 4, kind: input, shape index: {}]
  %s5 = inlined_call_operand.hbm [shape: f32[8,32], index: 5, kind: output, shape index: {}]
  %s6 = sld [smem:[#allocation0]]
  $region41: #{tpu_custom_call.1} parent=0
    _
  %s8 = ssub.s32 1, %s6
  %s9 = scalar_select 0, %s8, %s6
  %10 = sst [smem:[#allocation3]] %s0
  $region1: #{tpu_custom_call.1} parent=0
    #allocation4 [shape = 'u8[40960]{0}', space=vmem, size = 0xa000, scoped, tag = 'input window, operand 2, single buffered']
    #allocation5 [shape = 's32[1]{0}', space=sflag, size = 0x4, scoped, tag = 'scoped memory for tpu_custom_call.1']
    #allocation6 [shape = 's32[1]{0}', space=sflag, size = 0x4, scoped, tag = 'scoped memory for tpu_custom_call.1']
    #allocation7 [shape = 'u8[98304]{0}', space=vmem, size = 0x18000, scoped, tag = 'input window, operand 3, single buffered']
    #allocation8 [shape = 's32[1]{0}', space=sflag, size = 0x4, scoped, tag = 'scoped memory for tpu_custom_call.1']
    #allocation9 [shape = 'u8[4096]{0}', space=vmem, size = 0x1000, scoped, tag = 'output window, operand 0, single buffered']
    %11 = vsyncpa [#allocation5], 0
    %12 = vsyncpa [#allocation8], 0
    %13 = vsyncpa [#allocation6], 0
    // Predicated region
    $region2: #{tpu_custom_call.1} parent=1 // pred_check
      _
    $region3: #{tpu_custom_call.1} parent=1 // pred_check_branch
      %15 = sbr.rel (0) target = $region5
    $region4: #{tpu_custom_call.1} parent=1 // pred_region
      _
    $region5: #{tpu_custom_call.1} parent=1 // pred_fallthru
      _
    // Predicated region
    $region6: #{tpu_custom_call.1} parent=1 // pred_check
      _
    $region7: #{tpu_custom_call.1} parent=1 // pred_check_branch
      %17 = sbr.rel (0) target = $region9
    $region8: #{tpu_custom_call.1} parent=1 // pred_region
      %s19 = ssub.s32 1280, 1280
      %20 = vsyncadd [#allocation5], %s19
      %s21 = sshll.u32 [#allocation4], 4
      %s22 = int_to_ptr.vmem [resolvable:$true] %s21
      %27 = dma.hbm_to_vmem [thread:$0]  %s2, 1280, %s22, [#allocation5], 128, 128, 8
    $region9: #{tpu_custom_call.1} parent=1 // pred_fallthru
      _
    // Predicated region
    $region10: #{tpu_custom_call.1} parent=1 // pred_check
      _
    $region11: #{tpu_custom_call.1} parent=1 // pred_check_branch
      %29 = sbr.rel (0) target = $region13
    $region12: #{tpu_custom_call.1} parent=1 // pred_region
      %s31 = ssub.s32 3072, 3072
      %32 = vsyncadd [#allocation8], %s31
      %s33 = sshll.u32 [#allocation7], 4
      %s34 = int_to_ptr.vmem [resolvable:$true] %s33
      %39 = dma.hbm_to_vmem [thread:$0]  %s3, 3072, %s34, [#allocation8], 128, 128, 8
    $region13: #{tpu_custom_call.1} parent=1 // pred_fallthru
      _
    // Predicated region
    $region14: #{tpu_custom_call.1} parent=1 // pred_check
      _
    $region15: #{tpu_custom_call.1} parent=1 // pred_check_branch
      %41 = sbr.rel (0) target = $region17
    $region16: #{tpu_custom_call.1} parent=1 // pred_region
      _
    $region17: #{tpu_custom_call.1} parent=1 // pred_fallthru
      _
    // Predicated region
    $region18: #{tpu_custom_call.1} parent=1 // pred_check
      _
    $region19: #{tpu_custom_call.1} parent=1 // pred_check_branch
      %43 = sbr.rel (0) target = $region21
    $region20: #{tpu_custom_call.1} parent=1 // pred_region
      %44 = dma.done [#allocation5], 1280
    $region21: #{tpu_custom_call.1} parent=1 // pred_fallthru
      _
    // Predicated region
    $region22: #{tpu_custom_call.1} parent=1 // pred_check
      _
    $region23: #{tpu_custom_call.1} parent=1 // pred_check_branch
      %46 = sbr.rel (0) target = $region25
    $region24: #{tpu_custom_call.1} parent=1 // pred_region
      %47 = dma.done [#allocation8], 3072
    $region25: #{tpu_custom_call.1} parent=1 // pred_fallthru
      _
    %v48 = vld [vmem:[%s1] sm:$0xff]
    %s49 = sld [smem:[#allocation3]]
    // While loop
    $region26: #{tpu_custom_call.1} parent=1 // loop_pre_header
      _
    $region27: #{tpu_custom_call.1} parent=1 // loop_header
      %s51 = sphi 0, %s53
      %p52 = scmp.ge.s32.totalorder %s51, %s49
      %v56 = vphi 0.0, %v185
      %v57 = vphi 0.0, %v304
      %v58 = vphi 0.0, %v423
      %v59 = vphi 0.0, %v186
      %v60 = vphi 0.0, %v305
      %v61 = vphi 0.0, %v424
    $region28: #{tpu_custom_call.1} parent=1 // loop_header_branch
      %55 = sbr.rel (%p52) target = $region32
    $region29: #{tpu_custom_call.1} parent=1 // loop_body
      %v62 = vstv %s51
      %vm63 = vcmp.lt.s32.totalorder %v62, %v48
      %s64 = smul.u32 %s51, 8
      %s65 = scalar_lea.vmem [#allocation4], %s64
      %v66 = vld [vmem:[%s65] sm:$0xff]
      %68 = vrot.lane.b32.xlu0 %v56, 64
      %v69 = vpop.permute.xlu0 %68
      %vm71 = vcmask 261120
      %v72 = vsel %vm71, %v66, %v69
      %v73 = vld [vmem:[#allocation7] sm:$0xff]
      %v74 = vld [vmem:[#allocation7 + $0x8] sm:$0xff]
      %v75 = vld [vmem:[#allocation7 + $0x10] sm:$0xff]
      %v76 = vld [vmem:[#allocation7 + $0x18] sm:$0xff]
      %v77 = vld [vmem:[#allocation7 + $0x20] sm:$0xff]
      %v78 = vld [vmem:[#allocation7 + $0x28] sm:$0xff]
      %v79 = vld [vmem:[#allocation7 + $0x30] sm:$0xff]
      %v80 = vld [vmem:[#allocation7 + $0x38] sm:$0xff]
      %v81 = vld [vmem:[%s4] sm:$0xff]
      %vm82 = vcmask 523264
      %v84 = vsel %vm82, %v72, 0
      %86 = vmatprep.subr.mxu0 0.0
      %87 = vmatpush1.msra.mxu0 %v73
      %88 = vmatprep.subr.mxu0 0.0
      %89 = vmatpush1.msra.mxu0 %v74
      %90 = vmatprep.subr.mxu0 0.0
      %91 = vmatpush1.msra.mxu0 %v75
      %92 = vmatprep.subr.mxu0 0.0
      %93 = vmatpush1.msra.mxu0 %v76
      %94 = vmatprep.subr.mxu0 0.0
      %95 = vmatpush1.msra.mxu0 %v77
      %96 = vmatprep.subr.mxu0 0.0
      %97 = vmatpush1.msra.mxu0 %v78
      %98 = vmatprep.subr.mxu0 0.0
      %99 = vmatpush1.msra.mxu0 %v79
      %100 = vmatprep.subr.mxu0 0.0
      %101 = vmatpush1.msra.mxu0 %v80
      %102 = vmatprep.subr.mxu0 0.0
      %103 = vmatpush1.msra.mxu0 0.0
      %104 = vmatprep.subr.mxu0 0.0
      %105 = vmatpush1.msra.mxu0 0.0
      %106 = vmatprep.subr.mxu0 0.0
      %107 = vmatpush1.msra.mxu0 0.0
      %108 = vmatprep.subr.mxu0 0.0
      %109 = vmatpush1.msra.mxu0 0.0
      %110 = vmatprep.subr.mxu0 0.0
      %111 = vmatpush1.msra.mxu0 0.0
      %112 = vmatprep.subr.mxu0 0.0
      %113 = vmatpush1.msra.mxu0 0.0
      %114 = vmatprep.subr.mxu0 0.0
      %115 = vmatpush1.msra.mxu0 0.0
      %116 = vmatprep.subr.mxu0 0.0
      %117 = vmatpush1.msra.mxu0 0.0
      %118 = vmatprep.subr.mxu0 0.0
      %119 = vmatpush1.msra.mxu0 0.0
      %120 = vmatprep.subr.mxu0 0.0
      %121 = vmatpush1.msra.mxu0 0.0
      %122 = vmatprep.subr.mxu0 0.0
      %123 = vmatpush1.msra.mxu0 0.0
      %124 = vmatprep.subr.mxu0 0.0
      %125 = vmatpush1.msra.mxu0 0.0
      %126 = vmatprep.subr.mxu0 0.0
      %127 = vmatpush1.msra.mxu0 0.0
      %128 = vmatprep.subr.mxu0 0.0
      %129 = vmatpush1.msra.mxu0 0.0
      %130 = vmatprep.subr.mxu0 0.0
      %131 = vmatpush1.msra.mxu0 0.0
      %132 = vmatprep.subr.mxu0 0.0
      %133 = vmatpush1.msra.mxu0 0.0
      %134 = vmatprep.subr.mxu0 0.0
      %135 = vmatpush1.msra.mxu0 0.0
      %136 = vmatprep.subr.mxu0 0.0
      %137 = vmatpush1.msra.mxu0 0.0
      %138 = vmatprep.subr.mxu0 0.0
      %139 = vmatpush1.msra.mxu0 0.0
      %140 = vmatprep.subr.mxu0 0.0
      %141 = vmatpush1.msra.mxu0 0.0
      %142 = vmatprep.subr.mxu0 0.0
      %143 = vmatpush1.msra.mxu0 0.0
      %144 = vmatprep.subr.mxu0 0.0
      %145 = vmatpush1.msra.mxu0 0.0
      %146 = vmatprep.subr.mxu0 0.0
      %147 = vmatpush1.msra.mxu0 0.0
      %148 = vmatprep.subr.mxu0 0.0
      %149 = vmatpush1.msra.mxu0 0.0
      %150 = vmatprep.mubr.f32.mxu0 0.0
      %151 = vmatmul.mubr.f32.gmra.mrb[0].mxu0 %v84
      %v152 = vpop.f32.mrb[0].mxu0
      %v153 = vadd.f32 %v81, %v152
      %v154 = vpop.f32.mrb[0].mxu0
      %155 = vdwg.mxu0
      %v156 = vxor.u32 %v153, 2147483648
      %v157 = vmul.f32 %v156, 1.442695
      %v158 = vpow.pop %v157
      %v159 = vadd.f32 %v158, 1.0
      %v160 = vrcp.pop %v159
      %v161 = vmul.f32 1.0, %v160
      %v162 = vtanh.pop %v153
      %v163 = vmul.f32 %v161, %v59
      %165 = vrot.lane.b32.xlu0 %v162, 64
      %v166 = vpop.permute.xlu0 %165
      %v168 = vmul.f32 %v161, %v166
      %170 = vrot.lane.b32.xlu0 %v168, 32
      %v171 = vpop.permute.xlu0 %170
      %v173 = vadd.f32 %v163, %v171
      %v174 = vtanh.pop %v173
      %176 = vrot.lane.b32.xlu0 %v174, 64
      %v177 = vpop.permute.xlu0 %176
      %v179 = vmul.f32 %v161, %v177
      %v180 = vsel %vm63, 1, 0
      %181 = vset.pattern.permute.xlu0 0
      %182 = vperm.xlu0 %181, %v180
      %v183 = vpop.permute.xlu0 %182
      %vm184 = vcmp.eq.s32.totalorder %v183, 1
      %v185 = vsel %vm184, %v179, %v56
      %v186 = vsel %vm184, %v173, %v59
      %188 = vrot.lane.b32.xlu0 %v185, 32
      %v189 = vpop.permute.xlu0 %188
      %192 = vrot.lane.b32.xlu0 %v57, 64
      %v193 = vpop.permute.xlu0 %192
      %v195 = vsel %vm71, %v189, %v193
      %s196 = scalar_lea.vmem [#allocation7], 64
      %v197 = vld [vmem:[%s196] sm:$0xff]
      %v198 = vld [vmem:[%s196 + $0x8] sm:$0xff]
      %v199 = vld [vmem:[%s196 + $0x10] sm:$0xff]
      %v200 = vld [vmem:[%s196 + $0x18] sm:$0xff]
      %v201 = vld [vmem:[%s196 + $0x20] sm:$0xff]
      %v202 = vld [vmem:[%s196 + $0x28] sm:$0xff]
      %v203 = vld [vmem:[%s196 + $0x30] sm:$0xff]
      %v204 = vld [vmem:[%s196 + $0x38] sm:$0xff]
      %s205 = scalar_lea.vmem %s4, 8
      %v206 = vld [vmem:[%s205] sm:$0xff]
      %v208 = vsel %vm82, %v195, 0
      %210 = vmatprep.subr.mxu0 0.0
      %211 = vmatpush1.msra.mxu0 %v197
      %212 = vmatprep.subr.mxu0 0.0
      %213 = vmatpush1.msra.mxu0 %v198
      %214 = vmatprep.subr.mxu0 0.0
      %215 = vmatpush1.msra.mxu0 %v199
      %216 = vmatprep.subr.mxu0 0.0
      %217 = vmatpush1.msra.mxu0 %v200
      %218 = vmatprep.subr.mxu0 0.0
      %219 = vmatpush1.msra.mxu0 %v201
      %220 = vmatprep.subr.mxu0 0.0
      %221 = vmatpush1.msra.mxu0 %v202
      %222 = vmatprep.subr.mxu0 0.0
      %223 = vmatpush1.msra.mxu0 %v203
      %224 = vmatprep.subr.mxu0 0.0
      %225 = vmatpush1.msra.mxu0 %v204
      %226 = vmatprep.subr.mxu0 0.0
      %227 = vmatpush1.msra.mxu0 0.0
      %228 = vmatprep.subr.mxu0 0.0
      %229 = vmatpush1.msra.mxu0 0.0
      %230 = vmatprep.subr.mxu0 0.0
      %231 = vmatpush1.msra.mxu0 0.0
      %232 = vmatprep.subr.mxu0 0.0
      %233 = vmatpush1.msra.mxu0 0.0
      %234 = vmatprep.subr.mxu0 0.0
      %235 = vmatpush1.msra.mxu0 0.0
      %236 = vmatprep.subr.mxu0 0.0
      %237 = vmatpush1.msra.mxu0 0.0
      %238 = vmatprep.subr.mxu0 0.0
      %239 = vmatpush1.msra.mxu0 0.0
      %240 = vmatprep.subr.mxu0 0.0
      %241 = vmatpush1.msra.mxu0 0.0
      %242 = vmatprep.subr.mxu0 0.0
      %243 = vmatpush1.msra.mxu0 0.0
      %244 = vmatprep.subr.mxu0 0.0
      %245 = vmatpush1.msra.mxu0 0.0
      %246 = vmatprep.subr.mxu0 0.0
      %247 = vmatpush1.msra.mxu0 0.0
      %248 = vmatprep.subr.mxu0 0.0
      %249 = vmatpush1.msra.mxu0 0.0
      %250 = vmatprep.subr.mxu0 0.0
      %251 = vmatpush1.msra.mxu0 0.0
      %252 = vmatprep.subr.mxu0 0.0
      %253 = vmatpush1.msra.mxu0 0.0
      %254 = vmatprep.subr.mxu0 0.0
      %255 = vmatpush1.msra.mxu0 0.0
      %256 = vmatprep.subr.mxu0 0.0
      %257 = vmatpush1.msra.mxu0 0.0
      %258 = vmatprep.subr.mxu0 0.0
      %259 = vmatpush1.msra.mxu0 0.0
      %260 = vmatprep.subr.mxu0 0.0
      %261 = vmatpush1.msra.mxu0 0.0
      %262 = vmatprep.subr.mxu0 0.0
      %263 = vmatpush1.msra.mxu0 0.0
      %264 = vmatprep.subr.mxu0 0.0
      %265 = vmatpush1.msra.mxu0 0.0
      %266 = vmatprep.subr.mxu0 0.0
      %267 = vmatpush1.msra.mxu0 0.0
      %268 = vmatprep.subr.mxu0 0.0
      %269 = vmatpush1.msra.mxu0 0.0
      %270 = vmatprep.subr.mxu0 0.0
      %271 = vmatpush1.msra.mxu0 0.0
      %272 = vmatprep.subr.mxu0 0.0
      %273 = vmatpush1.msra.mxu0 0.0
      %274 = vmatprep.mubr.f32.mxu0 0.0
      %275 = vmatmul.mubr.f32.gmra.mrb[0].mxu0 %v208
      %v276 = vpop.f32.mrb[0].mxu0
      %v277 = vadd.f32 %v206, %v276
      %v278 = vpop.f32.mrb[0].mxu0
      %279 = vdwg.mxu0
      %v280 = vxor.u32 %v277, 2147483648
      %v281 = vmul.f32 %v280, 1.442695
      %v282 = vpow.pop %v281
      %v283 = vadd.f32 %v282, 1.0
      %v284 = vrcp.pop %v283
      %v285 = vmul.f32 1.0, %v284
      %v286 = vtanh.pop %v277
      %v287 = vmul.f32 %v285, %v60
      %289 = vrot.lane.b32.xlu0 %v286, 64
      %v290 = vpop.permute.xlu0 %289
      %v292 = vmul.f32 %v285, %v290
      %294 = vrot.lane.b32.xlu0 %v292, 32
      %v295 = vpop.permute.xlu0 %294
      %v297 = vadd.f32 %v287, %v295
      %v298 = vtanh.pop %v297
      %300 = vrot.lane.b32.xlu0 %v298, 64
      %v301 = vpop.permute.xlu0 %300
      %v303 = vmul.f32 %v285, %v301
      %v304 = vsel %vm184, %v303, %v57
      %v305 = vsel %vm184, %v297, %v60
      %307 = vrot.lane.b32.xlu0 %v304, 32
      %v308 = vpop.permute.xlu0 %307
      %311 = vrot.lane.b32.xlu0 %v58, 64
      %v312 = vpop.permute.xlu0 %311
      %v314 = vsel %vm71, %v308, %v312
      %s315 = scalar_lea.vmem [#allocation7], 128
      %v316 = vld [vmem:[%s315] sm:$0xff]
      %v317 = vld [vmem:[%s315 + $0x8] sm:$0xff]
      %v318 = vld [vmem:[%s315 + $0x10] sm:$0xff]
      %v319 = vld [vmem:[%s315 + $0x18] sm:$0xff]
      %v320 = vld [vmem:[%s315 + $0x20] sm:$0xff]
      %v321 = vld [vmem:[%s315 + $0x28] sm:$0xff]
      %v322 = vld [vmem:[%s315 + $0x30] sm:$0xff]
      %v323 = vld [vmem:[%s315 + $0x38] sm:$0xff]
      %s324 = scalar_lea.vmem %s4, 16
      %v325 = vld [vmem:[%s324] sm:$0xff]
      %v327 = vsel %vm82, %v314, 0
      %329 = vmatprep.subr.mxu0 0.0
      %330 = vmatpush1.msra.mxu0 %v316
      %331 = vmatprep.subr.mxu0 0.0
      %332 = vmatpush1.msra.mxu0 %v317
      %333 = vmatprep.subr.mxu0 0.0
      %334 = vmatpush1.msra.mxu0 %v318
      %335 = vmatprep.subr.mxu0 0.0
      %336 = vmatpush1.msra.mxu0 %v319
      %337 = vmatprep.subr.mxu0 0.0
      %338 = vmatpush1.msra.mxu0 %v320
      %339 = vmatprep.subr.mxu0 0.0
      %340 = vmatpush1.msra.mxu0 %v321
      %341 = vmatprep.subr.mxu0 0.0
      %342 = vmatpush1.msra.mxu0 %v322
      %343 = vmatprep.subr.mxu0 0.0
      %344 = vmatpush1.msra.mxu0 %v323
      %345 = vmatprep.subr.mxu0 0.0
      %346 = vmatpush1.msra.mxu0 0.0
      %347 = vmatprep.subr.mxu0 0.0
      %348 = vmatpush1.msra.mxu0 0.0
      %349 = vmatprep.subr.mxu0 0.0
      %350 = vmatpush1.msra.mxu0 0.0
      %351 = vmatprep.subr.mxu0 0.0
      %352 = vmatpush1.msra.mxu0 0.0
      %353 = vmatprep.subr.mxu0 0.0
      %354 = vmatpush1.msra.mxu0 0.0
      %355 = vmatprep.subr.mxu0 0.0
      %356 = vmatpush1.msra.mxu0 0.0
      %357 = vmatprep.subr.mxu0 0.0
      %358 = vmatpush1.msra.mxu0 0.0
      %359 = vmatprep.subr.mxu0 0.0
      %360 = vmatpush1.msra.mxu0 0.0
      %361 = vmatprep.subr.mxu0 0.0
      %362 = vmatpush1.msra.mxu0 0.0
      %363 = vmatprep.subr.mxu0 0.0
      %364 = vmatpush1.msra.mxu0 0.0
      %365 = vmatprep.subr.mxu0 0.0
      %366 = vmatpush1.msra.mxu0 0.0
      %367 = vmatprep.subr.mxu0 0.0
      %368 = vmatpush1.msra.mxu0 0.0
      %369 = vmatprep.subr.mxu0 0.0
      %370 = vmatpush1.msra.mxu0 0.0
      %371 = vmatprep.subr.mxu0 0.0
      %372 = vmatpush1.msra.mxu0 0.0
      %373 = vmatprep.subr.mxu0 0.0
      %374 = vmatpush1.msra.mxu0 0.0
      %375 = vmatprep.subr.mxu0 0.0
      %376 = vmatpush1.msra.mxu0 0.0
      %377 = vmatprep.subr.mxu0 0.0
      %378 = vmatpush1.msra.mxu0 0.0
      %379 = vmatprep.subr.mxu0 0.0
      %380 = vmatpush1.msra.mxu0 0.0
      %381 = vmatprep.subr.mxu0 0.0
      %382 = vmatpush1.msra.mxu0 0.0
      %383 = vmatprep.subr.mxu0 0.0
      %384 = vmatpush1.msra.mxu0 0.0
      %385 = vmatprep.subr.mxu0 0.0
      %386 = vmatpush1.msra.mxu0 0.0
      %387 = vmatprep.subr.mxu0 0.0
      %388 = vmatpush1.msra.mxu0 0.0
      %389 = vmatprep.subr.mxu0 0.0
      %390 = vmatpush1.msra.mxu0 0.0
      %391 = vmatprep.subr.mxu0 0.0
      %392 = vmatpush1.msra.mxu0 0.0
      %393 = vmatprep.mubr.f32.mxu0 0.0
      %394 = vmatmul.mubr.f32.gmra.mrb[0].mxu0 %v327
      %v395 = vpop.f32.mrb[0].mxu0
      %v396 = vadd.f32 %v325, %v395
      %v397 = vpop.f32.mrb[0].mxu0
      %398 = vdwg.mxu0
      %v399 = vxor.u32 %v396, 2147483648
      %v400 = vmul.f32 %v399, 1.442695
      %v401 = vpow.pop %v400
      %v402 = vadd.f32 %v401, 1.0
      %v403 = vrcp.pop %v402
      %v404 = vmul.f32 1.0, %v403
      %v405 = vtanh.pop %v396
      %v406 = vmul.f32 %v404, %v61
      %408 = vrot.lane.b32.xlu0 %v405, 64
      %v409 = vpop.permute.xlu0 %408
      %v411 = vmul.f32 %v404, %v409
      %413 = vrot.lane.b32.xlu0 %v411, 32
      %v414 = vpop.permute.xlu0 %413
      %v416 = vadd.f32 %v406, %v414
      %v417 = vtanh.pop %v416
      %419 = vrot.lane.b32.xlu0 %v417, 64
      %v420 = vpop.permute.xlu0 %419
      %v422 = vmul.f32 %v404, %v420
      %v423 = vsel %vm184, %v422, %v58
      %v424 = vsel %vm184, %v416, %v61
    $region30: #{tpu_custom_call.1} parent=1 // loop_footer
      %s53 = sadd.s32 %s51, 1
    $region31: #{tpu_custom_call.1} parent=1 // loop_footer_branch
      %50 = sbr.rel target = $region27
    $region32: #{tpu_custom_call.1} parent=1 // loop_exit
      _
    %426 = vrot.lane.b32.xlu0 %v58, 32
    %v427 = vpop.permute.xlu0 %426
    %vm429 = vcmask 261120
    %430 = vst.msk [vmem:[#allocation9] sm:$0xff] %vm429, %v427
    // Predicated region
    $region33: #{tpu_custom_call.1} parent=1 // pred_check
      _
    $region34: #{tpu_custom_call.1} parent=1 // pred_check_branch
      %432 = sbr.rel (0) target = $region36
    $region35: #{tpu_custom_call.1} parent=1 // pred_region
      %s434 = ssub.s32 128, 128
      %435 = vsyncadd [#allocation6], %s434
      %s437 = sshll.u32 [#allocation9], 4
      %s438 = int_to_ptr.vmem [resolvable:$true] %s437
      %440 = dma.vmem_to_hbm [thread:$0]  %s438, 128, %s5, [#allocation6]
    $region36: #{tpu_custom_call.1} parent=1 // pred_fallthru
      _
    // Predicated region
    $region37: #{tpu_custom_call.1} parent=1 // pred_check
      _
    $region38: #{tpu_custom_call.1} parent=1 // pred_check_branch
      %442 = sbr.rel (0) target = $region40
    $region39: #{tpu_custom_call.1} parent=1 // pred_region
      %443 = dma.done [#allocation6], 128
    $region40: #{tpu_custom_call.1} parent=1 // pred_fallthru
      _
    %444 = vsyncpa [#allocation5], 1
    %445 = vsyncpa [#allocation8], 1
    %446 = vsyncpa [#allocation6], 1

</llo_original>
